<compile_context>
chip_gen: v7x
topology: tpu7x:2x2x1
jax: 0.10.0
libtpu: 0.0.40
codegen_flags: <defaults>
</compile_context>

<pallas_src>
import math
from functools import partial

import jax
import jax.numpy as jnp
from jax.experimental import pallas as pl
from jax.experimental.pallas import tpu as pltpu

_MIB = 1024 * 1024


def _round_up(x, m):
    return (x + m - 1) // m * m


def _moco_logits_kernel(q_ref, lpos_ref, bank_ref, out_ref, *, inv_temp):
    """out tile = (q @ bank_tile) / T; the first queue tile gets l_pos in lane 0."""
    s = jnp.dot(q_ref[...], bank_ref[...], preferred_element_type=jnp.float32) * inv_temp

    @pl.when(pl.program_id(0) == 0)
    def _():
        # Column 0 of the full output is the reserved l_pos slot (bank column 0 is a
        # dummy); replace lane 0 of this tile with a full-tile vectorized select so the
        # store stays lane-dense and unmasked.
        lane = jax.lax.broadcasted_iota(jnp.int32, s.shape, dimension=1)
        out_ref[...] = jnp.where(lane == 0, lpos_ref[...], s).astype(out_ref.dtype)

    @pl.when(pl.program_id(0) > 0)
    def _():
        out_ref[...] = s.astype(out_ref.dtype)


def _vmem_capacity_bytes():
    try:
        return int(pltpu.get_tpu_info().vmem_capacity_bytes)
    except Exception:
        return 64 * _MIB  # assume the smallest current part (v7x, 64 MiB / TC)


def _pick_tiles(B, D, n_cols, bank_itemsize, out_itemsize, tq=None):
    """Batch tile, queue tile and a VMEM limit sized for the current TPU generation."""
    vmem_cap = _vmem_capacity_bytes()
    if vmem_cap >= 100 * _MIB:                    # v5e / v6e: 128 MiB physical VMEM
        budget, limit_cap, max_tq = 48 * _MIB, 80 * _MIB, 16384
    else:                                         # v7x: 64 MiB per TensorCore
        budget, limit_cap, max_tq = 18 * _MIB, 40 * _MIB, 8192

    tb = B if B <= 256 else 256                   # batch tile (inner grid axis)

    # Per-step VMEM: double-buffered bank tile + double-buffered out tile, plus the
    # small q / l_pos blocks.  (On v7x, pipeline_mode=pl.Buffered(3) on the bank spec
    # with tq ~2-4K is a further tuning knob; default double-buffering kept here.)
    resident = 2 * tb * D * bank_itemsize + 2 * tb * 4
    per_col = 2 * (D * bank_itemsize + tb * out_itemsize)
    if tq is None:
        tq = max(128, min((budget - resident) // per_col, max_tq) // 128 * 128)
        tq = min(tq, _round_up(n_cols, 128))      # never wider than the padded output
        if tq >= n_cols and n_cols > 256:         # keep >= 2 queue steps (v7x megacore)
            tq = _round_up((n_cols + 1) // 2, 128)
    assert tq % 128 == 0 and tq >= 128

    step_bytes = resident + per_col * tq
    vmem_limit = int(min(max(2 * step_bytes, 32 * _MIB), limit_cap))
    return tb, tq, vmem_limit


def init_moco_bank(feature_dim, queue_size, key, dtype=jnp.bfloat16):
    """(D, 1+Q) bank: column 0 reserved (l_pos slot), columns 1..Q ~ U(-stdv, stdv)."""
    stdv = 1.0 / math.sqrt(feature_dim / 3.0)
    mem = jax.random.uniform(key, (queue_size, feature_dim), dtype=jnp.float32)
    mem = mem * (2.0 * stdv) - stdv
    bank = jnp.zeros((feature_dim, 1 + queue_size), jnp.float32).at[:, 1:].set(mem.T)
    return bank.astype(dtype)


def bank_to_memory(bank):
    """Recover the module's (Q, D) memory-buffer view from the (D, 1+Q) bank."""
    return bank[:, 1:].T


def memory_moco_forward(q, k, k_all, bank, index, temperature=0.07, tq=None,
                        out_dtype=jnp.float32):
    """MemoryMoCo forward.

    q, k, k_all : (B, D) query / key / all-gathered key features.
    bank        : (D, 1+Q) negative bank (column 0 reserved, columns 1..Q = queue
                  rows 0..Q-1), typically bfloat16 -- see init_moco_bank.
    index       : int32 scalar (Python int or traced), current queue position.

    Returns (out, new_bank, new_index); out is the (B, 1+Q) array
    cat([l_pos, l_neg], 1) / temperature, matching the PyTorch module.
    Donate `bank` when jitting so the queue update happens in place.
    """
    B, D = q.shape
    Dm, n_cols = bank.shape
    assert Dm == D
    Q = n_cols - 1
    inv_temp = 1.0 / float(temperature)

    bank_isz = jnp.dtype(bank.dtype).itemsize
    out_isz = jnp.dtype(out_dtype).itemsize
    tb, tq, vmem_limit = _pick_tiles(B, D, n_cols, bank_isz, out_isz, tq=tq)

    # l_pos is O(B*D) VPU work; compute it (in f32) on the wrapper side and let the
    # kernel drop it into lane 0 of the first output tile.
    l_pos = (jnp.sum(q.astype(jnp.float32) * k.astype(jnp.float32),
                     axis=-1, keepdims=True) * inv_temp)
    q_mxu = q.astype(bank.dtype)                  # bf16 x bf16 -> f32 accumulate on MXU

    grid = (pl.cdiv(n_cols, tq), pl.cdiv(B, tb))  # queue outermost: bank streamed once

    out = pl.pallas_call(
        partial(_moco_logits_kernel, inv_temp=inv_temp),
        out_shape=jax.ShapeDtypeStruct((B, n_cols), out_dtype),
        grid_spec=pltpu.PrefetchScalarGridSpec(
            num_scalar_prefetch=0,
            grid=grid,
            in_specs=[
                pl.BlockSpec((tb, D), lambda jq, ib: (ib, 0)),   # q (small, per batch tile)
                pl.BlockSpec((tb, 1), lambda jq, ib: (ib, 0)),   # l_pos
                pl.BlockSpec((D, tq), lambda jq, ib: (0, jq)),   # bank tile (big stream)
            ],
            out_specs=pl.BlockSpec((tb, tq), lambda jq, ib: (ib, jq)),  # lane-dense logits
        ),
        compiler_params=pltpu.CompilerParams(
            dimension_semantics=("parallel", "parallel"),
            vmem_limit_bytes=vmem_limit,
        ),
    )(q_mxu, l_pos, bank)

    # no_grad queue update (index_copy_ equivalent): unique-index column scatter on the
    # transposed bank, O(B*D).  Index is traced, so a jitted training step does not
    # recompile per step; donate `bank` under jit for an in-place update.
    n_new = k_all.shape[0]
    index = jnp.asarray(index, jnp.int32)
    cols = 1 + jnp.mod(index + jnp.arange(n_new, dtype=jnp.int32), Q)
    new_bank = bank.at[:, cols].set(k_all.astype(bank.dtype).T, unique_indices=True)
    new_index = jnp.mod(index + n_new, Q)

    return out, new_bank, new_index


if __name__ == "__main__":
    # Small shapes consistent with the module's forward.
    B = 8            # batch
    D = 32           # feature_dim
    Q = 256          # queue_size
    temperature = 0.07

    key = jax.random.PRNGKey(0)
    kq, kk, kall, kmem = jax.random.split(key, 4)
    q = jax.random.normal(kq, (B, D), dtype=jnp.float32)
    k = jax.random.normal(kk, (B, D), dtype=jnp.float32)
    k_all = jax.random.normal(kall, (B, D), dtype=jnp.float32)

    bank = init_moco_bank(D, Q, kmem, dtype=jnp.bfloat16)

    fwd = jax.jit(memory_moco_forward, static_argnames=("temperature", "tq", "out_dtype"))

    index = 0
    out, new_bank, new_index = fwd(q, k, k_all, bank, index, temperature=temperature)
    out = jax.block_until_ready(out)
    new_bank = jax.block_until_ready(new_bank)

    # Reference (plain JAX) against the values the kernel actually consumes
    # (bf16 bank / bf16 q for l_neg; f32 q, k for l_pos).
    mem_f32 = bank_to_memory(bank).astype(jnp.float32)          # (Q, D)
    q_mx = q.astype(jnp.bfloat16).astype(jnp.float32)
    l_pos_ref = jnp.sum(q * k, axis=-1, keepdims=True)
    l_neg_ref = q_mx @ mem_f32.T
    out_ref = jnp.concatenate([l_pos_ref, l_neg_ref], axis=1) / temperature
    assert out.shape == (B, 1 + Q)
    assert jnp.allclose(out, out_ref, atol=1e-2, rtol=1e-3)

    # Queue-update reference (no wrap).
    k_all_q = k_all.astype(jnp.bfloat16).astype(jnp.float32)
    out_ids = (index + jnp.arange(B)) % Q
    mem_upd_ref = mem_f32.at[out_ids].set(k_all_q)
    assert jnp.allclose(bank_to_memory(new_bank).astype(jnp.float32), mem_upd_ref)
    assert int(new_index) == (index + B) % Q

    # Exercise the wrap-around path of the circular queue update (same jit trace:
    # the index is a traced scalar, so no recompile).
    wrap_index = Q - 3
    out2, new_bank2, new_index2 = fwd(q, k, k_all, bank, wrap_index, temperature=temperature)
    new_bank2 = jax.block_until_ready(new_bank2)
    out_ids2 = (wrap_index + jnp.arange(B)) % Q
    mem_upd_ref2 = mem_f32.at[out_ids2].set(k_all_q)
    assert jnp.allclose(bank_to_memory(new_bank2).astype(jnp.float32), mem_upd_ref2)
    assert int(new_index2) == (wrap_index + B) % Q
    assert jnp.allclose(out2, out_ref, atol=1e-2, rtol=1e-3)   # forward uses pre-update bank

    print("KERNEL_OK")
</pallas_src>

<mosaic_0001>
module attributes {stable_mosaic.version = 11 : i64} {
  func.func @_moco_logits_kernel(%arg0: i32, %arg1: i32, %arg2: memref<8x32xbf16, #tpu.memory_space<vmem>>, %arg3: memref<8x1xf32, #tpu.memory_space<vmem>>, %arg4: memref<32x256xbf16, #tpu.memory_space<vmem>>, %arg5: memref<8x256xf32, #tpu.memory_space<vmem>>) attributes {dimension_semantics = [#tpu.dimension_semantics<parallel>, #tpu.dimension_semantics<parallel>], iteration_bounds = array<i64: 2, 1>, scalar_prefetch = 0 : i64, scratch_operands = 0 : i64, tpu.core_type = #tpu.core_type<tc>, window_params = [{transform_indices = @transform_0, window_bounds = array<i64: 8, 32>}, {transform_indices = @transform_1, window_bounds = array<i64: 8, 1>}, {transform_indices = @transform_2, window_bounds = array<i64: 32, 256>}, {transform_indices = @transform_3, window_bounds = array<i64: 8, 256>}]} {
    %c0 = arith.constant 0 : index
    %c0_0 = arith.constant 0 : index
    %0 = vector.load %arg2[%c0, %c0_0] : memref<8x32xbf16, #tpu.memory_space<vmem>>, vector<8x32xbf16>
    %c0_1 = arith.constant 0 : index
    %c0_2 = arith.constant 0 : index
    %1 = vector.load %arg4[%c0_1, %c0_2] : memref<32x256xbf16, #tpu.memory_space<vmem>>, vector<32x256xbf16>
    %cst = arith.constant dense<0.000000e+00> : vector<8x256xf32>
    %2 = tpu.matmul %0, %1, %cst {dimension_numbers = #tpu.dot_dimension_numbers<[1], [0], [0], [1], [0, 0, 1, 1], [], []>} : vector<8x32xbf16>, vector<32x256xbf16>, vector<8x256xf32> -> vector<8x256xf32>
    %cst_3 = arith.constant 14.2857141 : f32
    %3 = vector.broadcast %cst_3 : f32 to vector<8x256xf32>
    %4 = arith.mulf %2, %3 : vector<8x256xf32>
    %c0_i32 = arith.constant 0 : i32
    %5 = arith.cmpi eq, %arg0, %c0_i32 : i32
    %6 = arith.extui %5 : i1 to i32
    %c0_i32_4 = arith.constant 0 : i32
    %7 = arith.cmpi ne, %6, %c0_i32_4 : i32
    scf.if %7 {
      %11 = tpu.iota {dimensions = array<i32: 1>} : vector<8x256xi32>
      %c0_i32_7 = arith.constant 0 : i32
      %12 = vector.broadcast %c0_i32_7 : i32 to vector<8x256xi32>
      %13 = arith.cmpi eq, %11, %12 : vector<8x256xi32>
      %c0_8 = arith.constant 0 : index
      %c0_9 = arith.constant 0 : index
      %14 = vector.load %arg3[%c0_8, %c0_9] : memref<8x1xf32, #tpu.memory_space<vmem>>, vector<8x1xf32>
      %15 = vector.shape_cast %14 : vector<8x1xf32> to vector<8x1xf32>
      %16 = vector.broadcast %15 : vector<8x1xf32> to vector<8x256xf32>
      %17 = arith.select %13, %16, %4 : vector<8x256xi1>, vector<8x256xf32>
      %c0_10 = arith.constant 0 : index
      %c0_11 = arith.constant 0 : index
      %18 = vector.load %arg5[%c0_10, %c0_11] : memref<8x256xf32, #tpu.memory_space<vmem>>, vector<8x256xf32>
      tpu.vector_store %arg5[%c0_10, %c0_11], %17 {strides = array<i32>} : memref<8x256xf32, #tpu.memory_space<vmem>>, vector<8x256xf32>,
    } else {
    }
    %c0_i32_5 = arith.constant 0 : i32
    %8 = arith.cmpi sgt, %arg0, %c0_i32_5 : i32
    %9 = arith.extui %8 : i1 to i32
    %c0_i32_6 = arith.constant 0 : i32
    %10 = arith.cmpi ne, %9, %c0_i32_6 : i32
    scf.if %10 {
      %c0_7 = arith.constant 0 : index
      %c0_8 = arith.constant 0 : index
      %11 = vector.load %arg5[%c0_7, %c0_8] : memref<8x256xf32, #tpu.memory_space<vmem>>, vector<8x256xf32>
      tpu.vector_store %arg5[%c0_7, %c0_8], %4 {strides = array<i32>} : memref<8x256xf32, #tpu.memory_space<vmem>>, vector<8x256xf32>,
    } else {
    }
    return
  }
  func.func @transform_0(%arg0: i32, %arg1: i32) -> (i32, i32) {
    %c0_i32 = arith.constant 0 : i32
    %c0_i32_0 = arith.constant 0 : i32
    return %arg1, %c0_i32 : i32, i32
  }
  func.func @transform_1(%arg0: i32, %arg1: i32) -> (i32, i32) {
    %c0_i32 = arith.constant 0 : i32
    %c0_i32_0 = arith.constant 0 : i32
    return %arg1, %c0_i32 : i32, i32
  }
  func.func @transform_2(%arg0: i32, %arg1: i32) -> (i32, i32) {
    %c0_i32 = arith.constant 0 : i32
    %c0_i32_0 = arith.constant 0 : i32
    return %c0_i32, %arg0 : i32, i32
  }
  func.func @transform_3(%arg0: i32, %arg1: i32) -> (i32, i32) {
    %c0_i32 = arith.constant 0 : i32
    return %arg1, %arg0 : i32, i32
  }
}

</mosaic_0001>

<llo_original>
// kernel: memory_moco_forward.1
$region0: #{memory_moco_forward.1}
  #allocation0 [shape = 'u32[]', space=smem, size = 0x4, offset = 0x4, fixed_abs, tag = 'smem constant byte address 0x4 - core index']
  #allocation1 [shape = 'u32[144,128]{1,0:T(1,128)}', space=vmem, size = 0x12000, scoped, tag = 'internal scratch']
  %s0 = inlined_call_operand.vmem [shape: bf16[8,32], index: 0, kind: input, shape index: {}]
  %s1 = inlined_call_operand.vmem [shape: f32[8,1], index: 1, kind: input, shape index: {}]
  %s2 = inlined_call_operand.vmem [shape: bf16[32,257], index: 2, kind: input, shape index: {}]
  %s3 = inlined_call_operand.hbm [shape: f32[8,257], index: 3, kind: output, shape index: {}]
  %s4 = sld [smem:[#allocation0]]
  $region119: #{memory_moco_forward.1} parent=0
    _
  %s6 = ssub.s32 1, %s4
  %s7 = scalar_select 0, %s6, %s4
  $region1: #{memory_moco_forward.1} parent=0
    #allocation2 [shape = 'u8[32768]{0}', space=vmem, size = 0x8000, scoped, tag = 'input window, operand 2']
    #allocation3 [shape = 'u8[16384]{0}', space=vmem, size = 0x4000, scoped, tag = 'output window, operand 0']
    #allocation4 [shape = 's32[2]{0}', space=sflag, size = 0x8, scoped, tag = 'scoped memory for memory_moco_forward.1']
    %8 = vsyncpa [#allocation4], 0
    %s9 = scalar_lea.sflag [#allocation4], 1
    %10 = vsyncpa %s9, 0
    loop: start=0, step=1, limit=4
    $region2: #{memory_moco_forward.1} parent=1 // loop_pre_header
      _
    $region3: #{memory_moco_forward.1} parent=1 // loop_header
      %s12 = sphi 0, %s16
      %p13 = scmp.ge.s32.totalorder %s12, 4
      %s19 = sphi 0, %s31
      %s20 = sphi 0, %s27
      %s21 = sphi 0, %s19
      %s22 = sphi 0, %s20
      %s23 = sphi 0, %s21
      %s24 = sphi 0, %s22
      %s34 = sphi 0, %s36
      %s37 = sphi 0, %s34
      %s38 = sphi 0, %s37
      %s54 = sphi 0, %s38
      %s60 = sphi 0, %s62
      %s63 = sphi 0, %s60
      %s64 = sphi 0, %s63
      %s80 = sphi 0, %s64
      %s86 = sphi 0, %s88
      %s89 = sphi 0, %s86
      %s90 = sphi 0, %s89
      %s106 = sphi 0, %s90
      %s114 = sphi 0, %s116
      %s117 = sphi 0, %s114
      %s118 = sphi 0, %s117
      %s134 = sphi 0, %s118
    $region4: #{memory_moco_forward.1} parent=1 // loop_header_branch
      %15 = sbr.rel (%p13) target = $region8
    $region5: #{memory_moco_forward.1} parent=1 // loop_body
      %s17 = ssub.s32 %s12, 1
      %s18 = ssub.s32 %s12, 2
      %s25 = sadd.s32 1, %s20
      %p26 = scmp.ge.s32.totalorder %s25, 1
      %s27 = scalar_select %p26, 0, %s25
      %s28 = sadd.s32 1, %s19
      %s29 = scalar_select %p26, %s28, %s19
      %p30 = scmp.ge.s32.totalorder %s29, 2
      %s31 = scalar_select %p30, 0, %s29
      %s32 = ssub.s32 %s20, %s27
      %p33 = scmp.eq.s32.totalorder %s32, 0
      %s35 = sadd.s32 %s34, 1
      %s36 = scalar_select %p33, %s34, %s35
      %p39 = pneg %p33
      %p40 = scmp.eq.s32.totalorder %s12, 1
      %p41 = por %p39, %p40
      %p42 = scmp.ne.s32.totalorder %s34, %s37
      %p43 = scmp.eq.s32.totalorder %s12, 0
      %p44 = por %p42, %p43
      %p45 = scmp.ne.s32.totalorder %s34, %s37
      %p46 = scmp.eq.s32.totalorder %s17, 1
      %p47 = por %p45, %p46
      %p48 = scmp.ne.s32.totalorder %s37, %s38
      %p49 = scmp.eq.s32.totalorder %s17, 0
      %p50 = por %p48, %p49
      %p51 = scmp.ne.s32.totalorder %s37, %s38
      %p52 = scmp.eq.s32.totalorder %s18, 1
      %p53 = por %p51, %p52
      %p55 = scmp.ne.s32.totalorder %s38, %s54
      %p56 = scmp.eq.s32.totalorder %s18, 0
      %p57 = por %p55, %p56
      %s58 = ssub.s32 %s20, %s27
      %p59 = scmp.eq.s32.totalorder %s58, 0
      %s61 = sadd.s32 %s60, 1
      %s62 = scalar_select %p59, %s60, %s61
      %p65 = pneg %p59
      %p66 = scmp.eq.s32.totalorder %s12, 1
      %p67 = por %p65, %p66
      %p68 = scmp.ne.s32.totalorder %s60, %s63
      %p69 = scmp.eq.s32.totalorder %s12, 0
      %p70 = por %p68, %p69
      %p71 = scmp.ne.s32.totalorder %s60, %s63
      %p72 = scmp.eq.s32.totalorder %s17, 1
      %p73 = por %p71, %p72
      %p74 = scmp.ne.s32.totalorder %s63, %s64
      %p75 = scmp.eq.s32.totalorder %s17, 0
      %p76 = por %p74, %p75
      %p77 = scmp.ne.s32.totalorder %s63, %s64
      %p78 = scmp.eq.s32.totalorder %s18, 1
      %p79 = por %p77, %p78
      %p81 = scmp.ne.s32.totalorder %s64, %s80
      %p82 = scmp.eq.s32.totalorder %s18, 0
      %p83 = por %p81, %p82
      %s84 = ssub.s32 %s19, %s31
      %p85 = scmp.eq.s32.totalorder %s84, 0
      %s87 = sadd.s32 %s86, 1
      %s88 = scalar_select %p85, %s86, %s87
      %p91 = pneg %p85
      %p92 = scmp.eq.s32.totalorder %s12, 1
      %p93 = por %p91, %p92
      %p94 = scmp.ne.s32.totalorder %s86, %s89
      %p95 = scmp.eq.s32.totalorder %s12, 0
      %p96 = por %p94, %p95
      %p97 = scmp.ne.s32.totalorder %s86, %s89
      %p98 = scmp.eq.s32.totalorder %s17, 1
      %p99 = por %p97, %p98
      %p100 = scmp.ne.s32.totalorder %s89, %s90
      %p101 = scmp.eq.s32.totalorder %s17, 0
      %p102 = por %p100, %p101
      %p103 = scmp.ne.s32.totalorder %s89, %s90
      %p104 = scmp.eq.s32.totalorder %s18, 1
      %p105 = por %p103, %p104
      %p107 = scmp.ne.s32.totalorder %s90, %s106
      %p108 = scmp.eq.s32.totalorder %s18, 0
      %p109 = por %p107, %p108
      %s110 = ssub.s32 %s20, %s27
      %s111 = ssub.s32 %s19, %s31
      %s112 = sor.u32 %s110, %s111
      %p113 = scmp.eq.s32.totalorder %s112, 0
      %s115 = sadd.s32 %s114, 1
      %s116 = scalar_select %p113, %s114, %s115
      %p119 = pneg %p113
      %p120 = scmp.eq.s32.totalorder %s12, 1
      %p121 = por %p119, %p120
      %p122 = scmp.ne.s32.totalorder %s114, %s117
      %p123 = scmp.eq.s32.totalorder %s12, 0
      %p124 = por %p122, %p123
      %p125 = scmp.ne.s32.totalorder %s114, %s117
      %p126 = scmp.eq.s32.totalorder %s17, 1
      %p127 = por %p125, %p126
      %p128 = scmp.ne.s32.totalorder %s117, %s118
      %p129 = scmp.eq.s32.totalorder %s17, 0
      %p130 = por %p128, %p129
      %p131 = scmp.ne.s32.totalorder %s117, %s118
      %p132 = scmp.eq.s32.totalorder %s18, 1
      %p133 = por %p131, %p132
      %p135 = scmp.ne.s32.totalorder %s118, %s134
      %p136 = scmp.eq.s32.totalorder %s18, 0
      %p137 = por %p135, %p136
      %p138 = scmp.le.s32.totalorder 1, %s12
      %p139 = scmp.lt.s32.totalorder %s12, 3
      %p140 = pnand %p138, %p139
      %p141 = pneg %p140
      // Predicated region
      $region9: #{memory_moco_forward.1} parent=5 // pred_check
        _
      $region10: #{memory_moco_forward.1} parent=5 // pred_check_branch
        %143 = sbr.rel (%p140) target = $region12
      $region11: #{memory_moco_forward.1} parent=5 // pred_region
        %s144 = ssub.s32 %s12, 1
        // Predicated region
        $region13: #{memory_moco_forward.1} parent=11 // pred_check
          %p145 = pneg %p50
        $region14: #{memory_moco_forward.1} parent=11 // pred_check_branch
          %147 = sbr.rel (%p145) target = $region16
        $region15: #{memory_moco_forward.1} parent=11 // pred_region
          %p148 = scmp.lt.s32.totalorder %s22, 0
          %s149 = scalar_select %p148, %s22, 0
          %s150 = smul.addr %s149, 4
          %s151 = scalar_lea.vmem %s0, %s150
        $region16: #{memory_moco_forward.1} parent=11 // pred_fallthru
          _
        // Predicated region
        $region17: #{memory_moco_forward.1} parent=11 // pred_check
          %p152 = pneg %p76
        $region18: #{memory_moco_forward.1} parent=11 // pred_check_branch
          %154 = sbr.rel (%p152) target = $region20
        $region19: #{memory_moco_forward.1} parent=11 // pred_region
          %p155 = scmp.lt.s32.totalorder %s22, 0
          %s156 = scalar_select %p155, %s22, 0
          %s157 = smul.addr %s156, 8
          %s158 = scalar_lea.vmem %s1, %s157
        $region20: #{memory_moco_forward.1} parent=11 // pred_fallthru
          _
      $region12: #{memory_moco_forward.1} parent=5 // pred_fallthru
        _
      %p159 = scmp.lt.s32.totalorder %s12, 2
      // Predicated region
      $region21: #{memory_moco_forward.1} parent=5 // pred_check
        %p160 = pneg %p159
      $region22: #{memory_moco_forward.1} parent=5 // pred_check_branch
        %162 = sbr.rel (%p160) target = $region24
      $region23: #{memory_moco_forward.1} parent=5 // pred_region
        // Predicated region
        $region25: #{memory_moco_forward.1} parent=23 // pred_check
          %p163 = pneg %p96
        $region26: #{memory_moco_forward.1} parent=23 // pred_check_branch
          %165 = sbr.rel (%p163) target = $region28
        $region27: #{memory_moco_forward.1} parent=23 // pred_region
          %s166 = sand.u32 %s86, 1
          %s167 = sand.u32 %s86, 1
          %s168 = smul.addr %s167, 32
          %s169 = scalar_lea.vmem [#allocation2], %s168
          %s170 = smul.u32 2, %s19
          %s171 = ssub.s32 3, %s170
          %p172 = scmp.lt.s32.totalorder %s171, 2
          %s173 = scalar_select %p172, %s171, 2
          %s174 = smul.u32 256, %s173
          %p175 = scmp.ne.s32.totalorder 0, %s174
          %s176 = smul.addr %s170, 4
          %s177 = scalar_lea.vmem %s2, %s176
          %s178 = smul.u32 %s173, 4
          // Predicated region
          $region29: #{memory_moco_forward.1} parent=27 // pred_check
            %p179 = pneg %p175
          $region30: #{memory_moco_forward.1} parent=27 // pred_check_branch
            %181 = sbr.rel (%p179) target = $region32
          $region31: #{memory_moco_forward.1} parent=27 // pred_region
            %p182 = scmp.lt.u32.totalorder %s178, 8
            %p183 = pneg %p182
            // Predicated region
            $region33: #{memory_moco_forward.1} parent=31 // pred_check
              _
            $region34: #{memory_moco_forward.1} parent=31 // pred_check_branch
              %185 = sbr.rel (%p182) target = $region36
            $region35: #{memory_moco_forward.1} parent=31 // pred_region
              %s206 = sand.u32 %s178, 7
              %p207 = scmp.eq.s32.totalorder %s206, 0
              // Predicated region
              $region48: #{memory_moco_forward.1} parent=35 // pred_check
                %p208 = pneg %p207
              $region49: #{memory_moco_forward.1} parent=35 // pred_check_branch
                %210 = sbr.rel (%p208) target = $region51
              $region50: #{memory_moco_forward.1} parent=35 // pred_region
                %s211 = sshrl.u32 %s178, 3
                %s212 = sshrl.u32 %s211, 4
                // While loop
                $region52: #{memory_moco_forward.1} parent=50 // loop_pre_header
                  _
                $region53: #{memory_moco_forward.1} parent=50 // loop_header
                  %s216 = sphi 0, %s218
                  %p217 = scmp.ge.s32.totalorder %s216, %s212
                  %s221 = sphi 0, %s354
                  %s222 = sphi %s177, %s357
                  %s223 = sphi %s169, %s358
                $region54: #{memory_moco_forward.1} parent=50 // loop_header_branch
                  %220 = sbr.rel (%p217) target = $region58
                $region55: #{memory_moco_forward.1} parent=50 // loop_body
                  %v224 = vld [vmem:[%s222] sm:$0xff]
                  %225 = vst [vmem:[%s223] sm:$0xff] %v224
                  %v226 = vld [vmem:[%s222 + $0x8] sm:$0xff]
                  %227 = vst [vmem:[%s223 + $0x8] sm:$0xff] %v226
                  %v228 = vld [vmem:[%s222 + $0x10] sm:$0xff]
                  %229 = vst [vmem:[%s223 + $0x10] sm:$0xff] %v228
                  %v230 = vld [vmem:[%s222 + $0x18] sm:$0xff]
                  %231 = vst [vmem:[%s223 + $0x18] sm:$0xff] %v230
                  %v232 = vld [vmem:[%s222 + $0x20] sm:$0xff]
                  %233 = vst [vmem:[%s223 + $0x20] sm:$0xff] %v232
                  %v234 = vld [vmem:[%s222 + $0x28] sm:$0xff]
                  %235 = vst [vmem:[%s223 + $0x28] sm:$0xff] %v234
                  %v236 = vld [vmem:[%s222 + $0x30] sm:$0xff]
                  %237 = vst [vmem:[%s223 + $0x30] sm:$0xff] %v236
                  %v238 = vld [vmem:[%s222 + $0x38] sm:$0xff]
                  %239 = vst [vmem:[%s223 + $0x38] sm:$0xff] %v238
                  %v240 = vld [vmem:[%s222 + $0x40] sm:$0xff]
                  %241 = vst [vmem:[%s223 + $0x40] sm:$0xff] %v240
                  %v242 = vld [vmem:[%s222 + $0x48] sm:$0xff]
                  %243 = vst [vmem:[%s223 + $0x48] sm:$0xff] %v242
                  %v244 = vld [vmem:[%s222 + $0x50] sm:$0xff]
                  %245 = vst [vmem:[%s223 + $0x50] sm:$0xff] %v244
                  %v246 = vld [vmem:[%s222 + $0x58] sm:$0xff]
                  %247 = vst [vmem:[%s223 + $0x58] sm:$0xff] %v246
                  %v248 = vld [vmem:[%s222 + $0x60] sm:$0xff]
                  %249 = vst [vmem:[%s223 + $0x60] sm:$0xff] %v248
                  %v250 = vld [vmem:[%s222 + $0x68] sm:$0xff]
                  %251 = vst [vmem:[%s223 + $0x68] sm:$0xff] %v250
                  %v252 = vld [vmem:[%s222 + $0x70] sm:$0xff]
                  %253 = vst [vmem:[%s223 + $0x70] sm:$0xff] %v252
                  %v254 = vld [vmem:[%s222 + $0x78] sm:$0xff]
                  %255 = vst [vmem:[%s223 + $0x78] sm:$0xff] %v254
                  %v256 = vld [vmem:[%s222 + $0xc] sm:$0xff]
                  %257 = vst [vmem:[%s223 + $0x8] sm:$0xff] %v256
                  %v258 = vld [vmem:[%s222 + $0x14] sm:$0xff]
                  %259 = vst [vmem:[%s223 + $0x10] sm:$0xff] %v258
                  %v260 = vld [vmem:[%s222 + $0x1c] sm:$0xff]
                  %261 = vst [vmem:[%s223 + $0x18] sm:$0xff] %v260
                  %v262 = vld [vmem:[%s222 + $0x24] sm:$0xff]
                  %263 = vst [vmem:[%s223 + $0x20] sm:$0xff] %v262
                  %v264 = vld [vmem:[%s222 + $0x2c] sm:$0xff]
                  %265 = vst [vmem:[%s223 + $0x28] sm:$0xff] %v264
                  %v266 = vld [vmem:[%s222 + $0x34] sm:$0xff]
                  %267 = vst [vmem:[%s223 + $0x30] sm:$0xff] %v266
                  %v268 = vld [vmem:[%s222 + $0x3c] sm:$0xff]
                  %269 = vst [vmem:[%s223 + $0x38] sm:$0xff] %v268
                  %v270 = vld [vmem:[%s222 + $0x44] sm:$0xff]
                  %271 = vst [vmem:[%s223 + $0x40] sm:$0xff] %v270
                  %v272 = vld [vmem:[%s222 + $0x4c] sm:$0xff]
                  %273 = vst [vmem:[%s223 + $0x48] sm:$0xff] %v272
                  %v274 = vld [vmem:[%s222 + $0x54] sm:$0xff]
                  %275 = vst [vmem:[%s223 + $0x50] sm:$0xff] %v274
                  %v276 = vld [vmem:[%s222 + $0x5c] sm:$0xff]
                  %277 = vst [vmem:[%s223 + $0x58] sm:$0xff] %v276
                  %v278 = vld [vmem:[%s222 + $0x64] sm:$0xff]
                  %279 = vst [vmem:[%s223 + $0x60] sm:$0xff] %v278
                  %v280 = vld [vmem:[%s222 + $0x6c] sm:$0xff]
                  %281 = vst [vmem:[%s223 + $0x68] sm:$0xff] %v280
                  %v282 = vld [vmem:[%s222 + $0x74] sm:$0xff]
                  %283 = vst [vmem:[%s223 + $0x70] sm:$0xff] %v282
                  %v284 = vld [vmem:[%s222 + $0x7c] sm:$0xff]
                  %285 = vst [vmem:[%s223 + $0x78] sm:$0xff] %v284
                  %v286 = vld [vmem:[%s222 + $0x84] sm:$0xff]
                  %287 = vst [vmem:[%s223 + $0x80] sm:$0xff] %v286
                  %v288 = vld [vmem:[%s222 + $0x18] sm:$0xff]
                  %289 = vst [vmem:[%s223 + $0x10] sm:$0xff] %v288
                  %v290 = vld [vmem:[%s222 + $0x20] sm:$0xff]
                  %291 = vst [vmem:[%s223 + $0x18] sm:$0xff] %v290
                  %v292 = vld [vmem:[%s222 + $0x28] sm:$0xff]
                  %293 = vst [vmem:[%s223 + $0x20] sm:$0xff] %v292
                  %v294 = vld [vmem:[%s222 + $0x30] sm:$0xff]
                  %295 = vst [vmem:[%s223 + $0x28] sm:$0xff] %v294
                  %v296 = vld [vmem:[%s222 + $0x38] sm:$0xff]
                  %297 = vst [vmem:[%s223 + $0x30] sm:$0xff] %v296
                  %v298 = vld [vmem:[%s222 + $0x40] sm:$0xff]
                  %299 = vst [vmem:[%s223 + $0x38] sm:$0xff] %v298
                  %v300 = vld [vmem:[%s222 + $0x48] sm:$0xff]
                  %301 = vst [vmem:[%s223 + $0x40] sm:$0xff] %v300
                  %v302 = vld [vmem:[%s222 + $0x50] sm:$0xff]
                  %303 = vst [vmem:[%s223 + $0x48] sm:$0xff] %v302
                  %v304 = vld [vmem:[%s222 + $0x58] sm:$0xff]
                  %305 = vst [vmem:[%s223 + $0x50] sm:$0xff] %v304
                  %v306 = vld [vmem:[%s222 + $0x60] sm:$0xff]
                  %307 = vst [vmem:[%s223 + $0x58] sm:$0xff] %v306
                  %v308 = vld [vmem:[%s222 + $0x68] sm:$0xff]
                  %309 = vst [vmem:[%s223 + $0x60] sm:$0xff] %v308
                  %v310 = vld [vmem:[%s222 + $0x70] sm:$0xff]
                  %311 = vst [vmem:[%s223 + $0x68] sm:$0xff] %v310
                  %v312 = vld [vmem:[%s222 + $0x78] sm:$0xff]
                  %313 = vst [vmem:[%s223 + $0x70] sm:$0xff] %v312
                  %v314 = vld [vmem:[%s222 + $0x80] sm:$0xff]
                  %315 = vst [vmem:[%s223 + $0x78] sm:$0xff] %v314
                  %v316 = vld [vmem:[%s222 + $0x88] sm:$0xff]
                  %317 = vst [vmem:[%s223 + $0x80] sm:$0xff] %v316
                  %v318 = vld [vmem:[%s222 + $0x90] sm:$0xff]
                  %319 = vst [vmem:[%s223 + $0x88] sm:$0xff] %v318
                  %v320 = vld [vmem:[%s222 + $0x24] sm:$0xff]
                  %321 = vst [vmem:[%s223 + $0x18] sm:$0xff] %v320
                  %v322 = vld [vmem:[%s222 + $0x2c] sm:$0xff]
                  %323 = vst [vmem:[%s223 + $0x20] sm:$0xff] %v322
                  %v324 = vld [vmem:[%s222 + $0x34] sm:$0xff]
                  %325 = vst [vmem:[%s223 + $0x28] sm:$0xff] %v324
                  %v326 = vld [vmem:[%s222 + $0x3c] sm:$0xff]
                  %327 = vst [vmem:[%s223 + $0x30] sm:$0xff] %v326
                  %v328 = vld [vmem:[%s222 + $0x44] sm:$0xff]
                  %329 = vst [vmem:[%s223 + $0x38] sm:$0xff] %v328
                  %v330 = vld [vmem:[%s222 + $0x4c] sm:$0xff]
                  %331 = vst [vmem:[%s223 + $0x40] sm:$0xff] %v330
                  %v332 = vld [vmem:[%s222 + $0x54] sm:$0xff]
                  %333 = vst [vmem:[%s223 + $0x48] sm:$0xff] %v332
                  %v334 = vld [vmem:[%s222 + $0x5c] sm:$0xff]
                  %335 = vst [vmem:[%s223 + $0x50] sm:$0xff] %v334
                  %v336 = vld [vmem:[%s222 + $0x64] sm:$0xff]
                  %337 = vst [vmem:[%s223 + $0x58] sm:$0xff] %v336
                  %v338 = vld [vmem:[%s222 + $0x6c] sm:$0xff]
                  %339 = vst [vmem:[%s223 + $0x60] sm:$0xff] %v338
                  %v340 = vld [vmem:[%s222 + $0x74] sm:$0xff]
                  %341 = vst [vmem:[%s223 + $0x68] sm:$0xff] %v340
                  %v342 = vld [vmem:[%s222 + $0x7c] sm:$0xff]
                  %343 = vst [vmem:[%s223 + $0x70] sm:$0xff] %v342
                  %v344 = vld [vmem:[%s222 + $0x84] sm:$0xff]
                  %345 = vst [vmem:[%s223 + $0x78] sm:$0xff] %v344
                  %v346 = vld [vmem:[%s222 + $0x8c] sm:$0xff]
                  %347 = vst [vmem:[%s223 + $0x80] sm:$0xff] %v346
                  %v348 = vld [vmem:[%s222 + $0x94] sm:$0xff]
                  %349 = vst [vmem:[%s223 + $0x88] sm:$0xff] %v348
                  %v350 = vld [vmem:[%s222 + $0x9c] sm:$0xff]
                  %351 = vst [vmem:[%s223 + $0x90] sm:$0xff] %v350
                  %s352 = sadd.s32 1, %s221
                  %p353 = scmp.ge.s32.totalorder %s352, %s212
                  %s354 = scalar_select %p353, 0, %s352
                  %s355 = smul.u32 %s354, 128
                  %s356 = smul.u32 %s354, 128
                  %s357 = scalar_lea.vmem %s177, %s355
                  %s358 = scalar_lea.vmem %s169, %s356 [#allocation2]
                $region56: #{memory_moco_forward.1} parent=50 // loop_footer
                  %s218 = sadd.s32 %s216, 1
                $region57: #{memory_moco_forward.1} parent=50 // loop_footer_branch
                  %215 = sbr.rel target = $region53
                $region58: #{memory_moco_forward.1} parent=50 // loop_exit
                  _
                %s359 = sshrl.u32 %s211, 4
                %s360 = sand.u32 %s211, 15
                %s361 = smul.u32 %s359, 16
                %s362 = smul.u32 128, %s361
                %s363 = sshra.s32 %s362, 4
                %s364 = scalar_lea.vmem %s177, %s363
                %s365 = smul.u32 128, %s361
                %s366 = sshra.s32 %s365, 4
                %s367 = scalar_lea.vmem %s169, %s366 [#allocation2]
                // While loop
                $region59: #{memory_moco_forward.1} parent=50 // loop_pre_header
                  _
                $region60: #{memory_moco_forward.1} parent=50 // loop_header
                  %s371 = sphi 0, %s373
                  %p372 = scmp.ge.s32.totalorder %s371, %s360
                  %s376 = sphi 0, %s389
                  %s377 = sphi %s364, %s392
                  %s378 = sphi %s367, %s393
                $region61: #{memory_moco_forward.1} parent=50 // loop_header_branch
                  %375 = sbr.rel (%p372) target = $region65
                $region62: #{memory_moco_forward.1} parent=50 // loop_body
                  %v379 = vld [vmem:[%s377] sm:$0xff]
                  %380 = vst [vmem:[%s378] sm:$0xff] %v379
                  %v381 = vld [vmem:[%s377 + $0xc] sm:$0xff]
                  %382 = vst [vmem:[%s378 + $0x8] sm:$0xff] %v381
                  %v383 = vld [vmem:[%s377 + $0x18] sm:$0xff]
                  %384 = vst [vmem:[%s378 + $0x10] sm:$0xff] %v383
                  %v385 = vld [vmem:[%s377 + $0x24] sm:$0xff]
                  %386 = vst [vmem:[%s378 + $0x18] sm:$0xff] %v385
                  %s387 = sadd.s32 1, %s376
                  %p388 = scmp.ge.s32.totalorder %s387, %s360
                  %s389 = scalar_select %p388, 0, %s387
                  %s390 = smul.u32 %s389, 8
                  %s391 = smul.u32 %s389, 8
                  %s392 = scalar_lea.vmem %s364, %s390
                  %s393 = scalar_lea.vmem %s367, %s391 [#allocation2]
                $region63: #{memory_moco_forward.1} parent=50 // loop_footer
                  %s373 = sadd.s32 %s371, 1
                $region64: #{memory_moco_forward.1} parent=50 // loop_footer_branch
                  %370 = sbr.rel target = $region60
                $region65: #{memory_moco_forward.1} parent=50 // loop_exit
                  _
              $region51: #{memory_moco_forward.1} parent=35 // pred_fallthru
                _
              %p394 = pneg %p207
              // Predicated region
              $region66: #{memory_moco_forward.1} parent=35 // pred_check
                _
              $region67: #{memory_moco_forward.1} parent=35 // pred_check_branch
                %396 = sbr.rel (%p207) target = $region69
              $region68: #{memory_moco_forward.1} parent=35 // pred_region
                %s397 = sand.u32 %s178, 7
                %s398 = ssub.s32 %s178, %s397
                %s399 = scalar_lea.vmem %s177, %s398
                %s400 = ssub.s32 %s178, %s397
                %s401 = scalar_lea.vmem %s169, %s400 [#allocation2]
                %s402 = sshrl.u32 %s178, 3
                %s403 = sshrl.u32 %s402, 4
                // While loop
                $region70: #{memory_moco_forward.1} parent=68 // loop_pre_header
                  _
                $region71: #{memory_moco_forward.1} parent=68 // loop_header
                  %s407 = sphi 0, %s409
                  %p408 = scmp.ge.s32.totalorder %s407, %s403
                  %s412 = sphi 0, %s545
                  %s413 = sphi %s177, %s548
                  %s414 = sphi %s169, %s549
                $region72: #{memory_moco_forward.1} parent=68 // loop_header_branch
                  %411 = sbr.rel (%p408) target = $region76
                $region73: #{memory_moco_forward.1} parent=68 // loop_body
                  %v415 = vld [vmem:[%s413] sm:$0xff]
                  %416 = vst [vmem:[%s414] sm:$0xff] %v415
                  %v417 = vld [vmem:[%s413 + $0x8] sm:$0xff]
                  %418 = vst [vmem:[%s414 + $0x8] sm:$0xff] %v417
                  %v419 = vld [vmem:[%s413 + $0x10] sm:$0xff]
                  %420 = vst [vmem:[%s414 + $0x10] sm:$0xff] %v419
                  %v421 = vld [vmem:[%s413 + $0x18] sm:$0xff]
                  %422 = vst [vmem:[%s414 + $0x18] sm:$0xff] %v421
                  %v423 = vld [vmem:[%s413 + $0x20] sm:$0xff]
                  %424 = vst [vmem:[%s414 + $0x20] sm:$0xff] %v423
                  %v425 = vld [vmem:[%s413 + $0x28] sm:$0xff]
                  %426 = vst [vmem:[%s414 + $0x28] sm:$0xff] %v425
                  %v427 = vld [vmem:[%s413 + $0x30] sm:$0xff]
                  %428 = vst [vmem:[%s414 + $0x30] sm:$0xff] %v427
                  %v429 = vld [vmem:[%s413 + $0x38] sm:$0xff]
                  %430 = vst [vmem:[%s414 + $0x38] sm:$0xff] %v429
                  %v431 = vld [vmem:[%s413 + $0x40] sm:$0xff]
                  %432 = vst [vmem:[%s414 + $0x40] sm:$0xff] %v431
                  %v433 = vld [vmem:[%s413 + $0x48] sm:$0xff]
                  %434 = vst [vmem:[%s414 + $0x48] sm:$0xff] %v433
                  %v435 = vld [vmem:[%s413 + $0x50] sm:$0xff]
                  %436 = vst [vmem:[%s414 + $0x50] sm:$0xff] %v435
                  %v437 = vld [vmem:[%s413 + $0x58] sm:$0xff]
                  %438 = vst [vmem:[%s414 + $0x58] sm:$0xff] %v437
                  %v439 = vld [vmem:[%s413 + $0x60] sm:$0xff]
                  %440 = vst [vmem:[%s414 + $0x60] sm:$0xff] %v439
                  %v441 = vld [vmem:[%s413 + $0x68] sm:$0xff]
                  %442 = vst [vmem:[%s414 + $0x68] sm:$0xff] %v441
                  %v443 = vld [vmem:[%s413 + $0x70] sm:$0xff]
                  %444 = vst [vmem:[%s414 + $0x70] sm:$0xff] %v443
                  %v445 = vld [vmem:[%s413 + $0x78] sm:$0xff]
                  %446 = vst [vmem:[%s414 + $0x78] sm:$0xff] %v445
                  %v447 = vld [vmem:[%s413 + $0xc] sm:$0xff]
                  %448 = vst [vmem:[%s414 + $0x8] sm:$0xff] %v447
                  %v449 = vld [vmem:[%s413 + $0x14] sm:$0xff]
                  %450 = vst [vmem:[%s414 + $0x10] sm:$0xff] %v449
                  %v451 = vld [vmem:[%s413 + $0x1c] sm:$0xff]
                  %452 = vst [vmem:[%s414 + $0x18] sm:$0xff] %v451
                  %v453 = vld [vmem:[%s413 + $0x24] sm:$0xff]
                  %454 = vst [vmem:[%s414 + $0x20] sm:$0xff] %v453
                  %v455 = vld [vmem:[%s413 + $0x2c] sm:$0xff]
                  %456 = vst [vmem:[%s414 + $0x28] sm:$0xff] %v455
                  %v457 = vld [vmem:[%s413 + $0x34] sm:$0xff]
                  %458 = vst [vmem:[%s414 + $0x30] sm:$0xff] %v457
                  %v459 = vld [vmem:[%s413 + $0x3c] sm:$0xff]
                  %460 = vst [vmem:[%s414 + $0x38] sm:$0xff] %v459
                  %v461 = vld [vmem:[%s413 + $0x44] sm:$0xff]
                  %462 = vst [vmem:[%s414 + $0x40] sm:$0xff] %v461
                  %v463 = vld [vmem:[%s413 + $0x4c] sm:$0xff]
                  %464 = vst [vmem:[%s414 + $0x48] sm:$0xff] %v463
                  %v465 = vld [vmem:[%s413 + $0x54] sm:$0xff]
                  %466 = vst [vmem:[%s414 + $0x50] sm:$0xff] %v465
                  %v467 = vld [vmem:[%s413 + $0x5c] sm:$0xff]
                  %468 = vst [vmem:[%s414 + $0x58] sm:$0xff] %v467
                  %v469 = vld [vmem:[%s413 + $0x64] sm:$0xff]
                  %470 = vst [vmem:[%s414 + $0x60] sm:$0xff] %v469
                  %v471 = vld [vmem:[%s413 + $0x6c] sm:$0xff]
                  %472 = vst [vmem:[%s414 + $0x68] sm:$0xff] %v471
                  %v473 = vld [vmem:[%s413 + $0x74] sm:$0xff]
                  %474 = vst [vmem:[%s414 + $0x70] sm:$0xff] %v473
                  %v475 = vld [vmem:[%s413 + $0x7c] sm:$0xff]
                  %476 = vst [vmem:[%s414 + $0x78] sm:$0xff] %v475
                  %v477 = vld [vmem:[%s413 + $0x84] sm:$0xff]
                  %478 = vst [vmem:[%s414 + $0x80] sm:$0xff] %v477
                  %v479 = vld [vmem:[%s413 + $0x18] sm:$0xff]
                  %480 = vst [vmem:[%s414 + $0x10] sm:$0xff] %v479
                  %v481 = vld [vmem:[%s413 + $0x20] sm:$0xff]
                  %482 = vst [vmem:[%s414 + $0x18] sm:$0xff] %v481
                  %v483 = vld [vmem:[%s413 + $0x28] sm:$0xff]
                  %484 = vst [vmem:[%s414 + $0x20] sm:$0xff] %v483
                  %v485 = vld [vmem:[%s413 + $0x30] sm:$0xff]
                  %486 = vst [vmem:[%s414 + $0x28] sm:$0xff] %v485
                  %v487 = vld [vmem:[%s413 + $0x38] sm:$0xff]
                  %488 = vst [vmem:[%s414 + $0x30] sm:$0xff] %v487
                  %v489 = vld [vmem:[%s413 + $0x40] sm:$0xff]
                  %490 = vst [vmem:[%s414 + $0x38] sm:$0xff] %v489
                  %v491 = vld [vmem:[%s413 + $0x48] sm:$0xff]
                  %492 = vst [vmem:[%s414 + $0x40] sm:$0xff] %v491
                  %v493 = vld [vmem:[%s413 + $0x50] sm:$0xff]
                  %494 = vst [vmem:[%s414 + $0x48] sm:$0xff] %v493
                  %v495 = vld [vmem:[%s413 + $0x58] sm:$0xff]
                  %496 = vst [vmem:[%s414 + $0x50] sm:$0xff] %v495
                  %v497 = vld [vmem:[%s413 + $0x60] sm:$0xff]
                  %498 = vst [vmem:[%s414 + $0x58] sm:$0xff] %v497
                  %v499 = vld [vmem:[%s413 + $0x68] sm:$0xff]
                  %500 = vst [vmem:[%s414 + $0x60] sm:$0xff] %v499
                  %v501 = vld [vmem:[%s413 + $0x70] sm:$0xff]
                  %502 = vst [vmem:[%s414 + $0x68] sm:$0xff] %v501
                  %v503 = vld [vmem:[%s413 + $0x78] sm:$0xff]
                  %504 = vst [vmem:[%s414 + $0x70] sm:$0xff] %v503
                  %v505 = vld [vmem:[%s413 + $0x80] sm:$0xff]
                  %506 = vst [vmem:[%s414 + $0x78] sm:$0xff] %v505
                  %v507 = vld [vmem:[%s413 + $0x88] sm:$0xff]
                  %508 = vst [vmem:[%s414 + $0x80] sm:$0xff] %v507
                  %v509 = vld [vmem:[%s413 + $0x90] sm:$0xff]
                  %510 = vst [vmem:[%s414 + $0x88] sm:$0xff] %v509
                  %v511 = vld [vmem:[%s413 + $0x24] sm:$0xff]
                  %512 = vst [vmem:[%s414 + $0x18] sm:$0xff] %v511
                  %v513 = vld [vmem:[%s413 + $0x2c] sm:$0xff]
                  %514 = vst [vmem:[%s414 + $0x20] sm:$0xff] %v513
                  %v515 = vld [vmem:[%s413 + $0x34] sm:$0xff]
                  %516 = vst [vmem:[%s414 + $0x28] sm:$0xff] %v515
                  %v517 = vld [vmem:[%s413 + $0x3c] sm:$0xff]
                  %518 = vst [vmem:[%s414 + $0x30] sm:$0xff] %v517
                  %v519 = vld [vmem:[%s413 + $0x44] sm:$0xff]
                  %520 = vst [vmem:[%s414 + $0x38] sm:$0xff] %v519
                  %v521 = vld [vmem:[%s413 + $0x4c] sm:$0xff]
                  %522 = vst [vmem:[%s414 + $0x40] sm:$0xff] %v521
                  %v523 = vld [vmem:[%s413 + $0x54] sm:$0xff]
                  %524 = vst [vmem:[%s414 + $0x48] sm:$0xff] %v523
                  %v525 = vld [vmem:[%s413 + $0x5c] sm:$0xff]
                  %526 = vst [vmem:[%s414 + $0x50] sm:$0xff] %v525
                  %v527 = vld [vmem:[%s413 + $0x64] sm:$0xff]
                  %528 = vst [vmem:[%s414 + $0x58] sm:$0xff] %v527
                  %v529 = vld [vmem:[%s413 + $0x6c] sm:$0xff]
                  %530 = vst [vmem:[%s414 + $0x60] sm:$0xff] %v529
                  %v531 = vld [vmem:[%s413 + $0x74] sm:$0xff]
                  %532 = vst [vmem:[%s414 + $0x68] sm:$0xff] %v531
                  %v533 = vld [vmem:[%s413 + $0x7c] sm:$0xff]
                  %534 = vst [vmem:[%s414 + $0x70] sm:$0xff] %v533
                  %v535 = vld [vmem:[%s413 + $0x84] sm:$0xff]
                  %536 = vst [vmem:[%s414 + $0x78] sm:$0xff] %v535
                  %v537 = vld [vmem:[%s413 + $0x8c] sm:$0xff]
                  %538 = vst [vmem:[%s414 + $0x80] sm:$0xff] %v537
                  %v539 = vld [vmem:[%s413 + $0x94] sm:$0xff]
                  %540 = vst [vmem:[%s414 + $0x88] sm:$0xff] %v539
                  %v541 = vld [vmem:[%s413 + $0x9c] sm:$0xff]
                  %542 = vst [vmem:[%s414 + $0x90] sm:$0xff] %v541
                  %s543 = sadd.s32 1, %s412
                  %p544 = scmp.ge.s32.totalorder %s543, %s403
                  %s545 = scalar_select %p544, 0, %s543
                  %s546 = smul.u32 %s545, 128
                  %s547 = smul.u32 %s545, 128
                  %s548 = scalar_lea.vmem %s177, %s546
                  %s549 = scalar_lea.vmem %s169, %s547 [#allocation2]
                $region74: #{memory_moco_forward.1} parent=68 // loop_footer
                  %s409 = sadd.s32 %s407, 1
                $region75: #{memory_moco_forward.1} parent=68 // loop_footer_branch
                  %406 = sbr.rel target = $region71
                $region76: #{memory_moco_forward.1} parent=68 // loop_exit
                  _
                %s550 = sshrl.u32 %s402, 4
                %s551 = sand.u32 %s402, 15
                %s552 = smul.u32 %s550, 16
                %s553 = smul.u32 128, %s552
                %s554 = sshra.s32 %s553, 4
                %s555 = scalar_lea.vmem %s177, %s554
                %s556 = smul.u32 128, %s552
                %s557 = sshra.s32 %s556, 4
                %s558 = scalar_lea.vmem %s169, %s557 [#allocation2]
                // While loop
                $region77: #{memory_moco_forward.1} parent=68 // loop_pre_header
                  _
                $region78: #{memory_moco_forward.1} parent=68 // loop_header
                  %s562 = sphi 0, %s564
                  %p563 = scmp.ge.s32.totalorder %s562, %s551
                  %s567 = sphi 0, %s580
                  %s568 = sphi %s555, %s583
                  %s569 = sphi %s558, %s584
                $region79: #{memory_moco_forward.1} parent=68 // loop_header_branch
                  %566 = sbr.rel (%p563) target = $region83
                $region80: #{memory_moco_forward.1} parent=68 // loop_body
                  %v570 = vld [vmem:[%s568] sm:$0xff]
                  %571 = vst [vmem:[%s569] sm:$0xff] %v570
                  %v572 = vld [vmem:[%s568 + $0xc] sm:$0xff]
                  %573 = vst [vmem:[%s569 + $0x8] sm:$0xff] %v572
                  %v574 = vld [vmem:[%s568 + $0x18] sm:$0xff]
                  %575 = vst [vmem:[%s569 + $0x10] sm:$0xff] %v574
                  %v576 = vld [vmem:[%s568 + $0x24] sm:$0xff]
                  %577 = vst [vmem:[%s569 + $0x18] sm:$0xff] %v576
                  %s578 = sadd.s32 1, %s567
                  %p579 = scmp.ge.s32.totalorder %s578, %s551
                  %s580 = scalar_select %p579, 0, %s578
                  %s581 = smul.u32 %s580, 8
                  %s582 = smul.u32 %s580, 8
                  %s583 = scalar_lea.vmem %s555, %s581
                  %s584 = scalar_lea.vmem %s558, %s582 [#allocation2]
                $region81: #{memory_moco_forward.1} parent=68 // loop_footer
                  %s564 = sadd.s32 %s562, 1
                $region82: #{memory_moco_forward.1} parent=68 // loop_footer_branch
                  %561 = sbr.rel target = $region78
                $region83: #{memory_moco_forward.1} parent=68 // loop_exit
                  _
                %s585 = sshllo.u32 0, %s397
                loop: start=0, step=1, limit=1
                $region84: #{memory_moco_forward.1} parent=68 // loop_pre_header
                  _
                $region85: #{memory_moco_forward.1} parent=68 // loop_header
                  %s587 = sphi 0, %s591
                  %p588 = scmp.ge.s32.totalorder %s587, 1
                  %s592 = sphi %s399, %s399
                  %s593 = sphi %s401, %s401
                $region86: #{memory_moco_forward.1} parent=68 // loop_header_branch
                  %590 = sbr.rel (%p588) target = $region90
                $region87: #{memory_moco_forward.1} parent=68 // loop_body
                  %v594 = vld [vmem:[%s592] sm:%s585]
                  %595 = vst [vmem:[%s593] sm:%s585] %v594
                  %v596 = vld [vmem:[%s592 + $0xc] sm:%s585]
                  %597 = vst [vmem:[%s593 + $0x8] sm:%s585] %v596
                  %v598 = vld [vmem:[%s592 + $0x18] sm:%s585]
                  %599 = vst [vmem:[%s593 + $0x10] sm:%s585] %v598
                  %v600 = vld [vmem:[%s592 + $0x24] sm:%s585]
                  %601 = vst [vmem:[%s593 + $0x18] sm:%s585] %v600
                $region88: #{memory_moco_forward.1} parent=68 // loop_footer
                  %s591 = sadd.s32 1, %s587
                $region89: #{memory_moco_forward.1} parent=68 // loop_footer_branch
                  %586 = sbr.rel target = $region85
                $region90: #{memory_moco_forward.1} parent=68 // loop_exit
                  _
              $region69: #{memory_moco_forward.1} parent=35 // pred_fallthru
                _
            $region36: #{memory_moco_forward.1} parent=31 // pred_fallthru
              _
            // Predicated region
            $region37: #{memory_moco_forward.1} parent=31 // pred_check
              %p186 = pneg %p182
            $region38: #{memory_moco_forward.1} parent=31 // pred_check_branch
              %188 = sbr.rel (%p186) target = $region40
            $region39: #{memory_moco_forward.1} parent=31 // pred_region
              %s189 = sshllo.u32 0, %s178
              loop: start=0, step=1, limit=1
              $region41: #{memory_moco_forward.1} parent=39 // loop_pre_header
                _
              $region42: #{memory_moco_forward.1} parent=39 // loop_header
                %s191 = sphi 0, %s195
                %p192 = scmp.ge.s32.totalorder %s191, 1
                %s196 = sphi %s177, %s177
                %s197 = sphi %s169, %s169
              $region43: #{memory_moco_forward.1} parent=39 // loop_header_branch
                %194 = sbr.rel (%p192) target = $region47
              $region44: #{memory_moco_forward.1} parent=39 // loop_body
                %v198 = vld [vmem:[%s196] sm:%s189]
                %199 = vst [vmem:[%s197] sm:%s189] %v198
                %v200 = vld [vmem:[%s196 + $0xc] sm:%s189]
                %201 = vst [vmem:[%s197 + $0x8] sm:%s189] %v200
                %v202 = vld [vmem:[%s196 + $0x18] sm:%s189]
                %203 = vst [vmem:[%s197 + $0x10] sm:%s189] %v202
                %v204 = vld [vmem:[%s196 + $0x24] sm:%s189]
                %205 = vst [vmem:[%s197 + $0x18] sm:%s189] %v204
              $region45: #{memory_moco_forward.1} parent=39 // loop_footer
                %s195 = sadd.s32 1, %s191
              $region46: #{memory_moco_forward.1} parent=39 // loop_footer_branch
                %190 = sbr.rel target = $region42
              $region47: #{memory_moco_forward.1} parent=39 // loop_exit
                _
            $region40: #{memory_moco_forward.1} parent=31 // pred_fallthru
              _
          $region32: #{memory_moco_forward.1} parent=27 // pred_fallthru
            _
          %602 = vnop
        $region28: #{memory_moco_forward.1} parent=23 // pred_fallthru
          _
      $region24: #{memory_moco_forward.1} parent=5 // pred_fallthru
        _
      %p603 = scmp.le.s32.totalorder 1, %s12
      %p604 = scmp.lt.s32.totalorder %s12, 3
      %p605 = pnand %p603, %p604
      %p606 = pneg %p605
      // Predicated region
      $region91: #{memory_moco_forward.1} parent=5 // pred_check
        _
      $region92: #{memory_moco_forward.1} parent=5 // pred_check_branch
        %608 = sbr.rel (%p605) target = $region94
      $region93: #{memory_moco_forward.1} parent=5 // pred_region
        %s609 = ssub.s32 %s12, 1
        %s610 = sand.u32 %s89, 1
        %s611 = sand.u32 %s89, 1
        %s612 = smul.addr %s611, 32
        %s613 = scalar_lea.vmem [#allocation2], %s612
        // Predicated region
        $region95: #{memory_moco_forward.1} parent=93 // pred_check
          %p614 = pneg %p102
        $region96: #{memory_moco_forward.1} parent=93 // pred_check_branch
          %616 = sbr.rel (%p614) target = $region98
        $region97: #{memory_moco_forward.1} parent=93 // pred_region
          _
        $region98: #{memory_moco_forward.1} parent=93 // pred_fallthru
          _
        %p617 = scmp.lt.s32.totalorder %s22, 0
        %s618 = scalar_select %p617, %s22, 0
        %s619 = smul.addr %s618, 4
        %s620 = scalar_lea.vmem %s0, %s619
        %p621 = pneg %p50
        %p622 = pneg %p47
        %p623 = scmp.lt.s32.totalorder %s22, 0
        %s624 = scalar_select %p623, %s22, 0
        %s625 = smul.addr %s624, 8
        %s626 = scalar_lea.vmem %s1, %s625
        %p627 = pneg %p76
        %p628 = pneg %p73
        %s629 = sand.u32 %s89, 1
        %s630 = sand.u32 %s89, 1
        %s631 = smul.addr %s630, 32
        %s632 = scalar_lea.vmem [#allocation2], %s631
        %p633 = pneg %p102
        %p634 = pneg %p99
        %p635 = pneg %p130
        %p636 = pneg %p127
        %s637 = sand.u32 %s117, 1
        %s638 = scalar_lea.sflag [#allocation4], %s637
        %s639 = sand.u32 %s117, 1
        %s640 = smul.addr %s639, 16
        %s641 = scalar_lea.vmem [#allocation3], %s640
        %p642 = scmp.lt.s32.totalorder %s22, 0
        %s643 = scalar_select %p642, %s22, 0
        %s644 = smul.addr %s643, 4
        %s645 = scalar_lea.vmem %s0, %s644
        %p646 = scmp.lt.s32.totalorder %s22, 0
        %s647 = scalar_select %p646, %s22, 0
        %s648 = smul.addr %s647, 8
        %s649 = scalar_lea.vmem %s1, %s648
        %s650 = smul.u32 2, %s21
        %s651 = ssub.s32 3, %s650
        %p652 = scmp.lt.s32.totalorder %s651, 2
        %s653 = scalar_select %p652, %s651, 2
        %s654 = smul.u32 256, %s653
        %s655 = smul.u32 2, %s21
        %s656 = ssub.s32 3, %s655
        %p657 = scmp.lt.s32.totalorder %s656, 2
        %s658 = scalar_select %p657, %s656, 2
        %s659 = smul.u32 128, %s658
        %v661 = vld [vmem:[%s645] sm:$0xf]
        %v662 = vld [vmem:[%s613] sm:$0xff]
        %v663 = vld [vmem:[%s613 + $0x8] sm:$0xff]
        %v664 = vld [vmem:[%s613 + $0x10] sm:$0xff]
        %v665 = vld [vmem:[%s613 + $0x18] sm:$0xff]
        %v670 = vunpack.c.l.b16 %v662
        %v671 = vunpack.c.h.b16 %v662
        %v672 = vunpack.c.l.b16 %v663
        %v673 = vunpack.c.h.b16 %v663
        %v674 = vunpack.c.l.b16 %v664
        %v675 = vunpack.c.h.b16 %v664
        %v676 = vunpack.c.l.b16 %v665
        %v677 = vunpack.c.h.b16 %v665
        %v678 = vpack.c.b16 %v672, %v670
        %v679 = vpack.c.b16 %v673, %v671
        %v680 = vpack.c.b16 %v676, %v674
        %v681 = vpack.c.b16 %v677, %v675
        %vm686 = vcmask 261120
        %v688 = vsel %vm686, %v661, 0
        %690 = vmatprep.subr.bf16.mxu0 %v679
        %691 = vmatpush1.bf16.msra.mxu0 %v678
        %692 = vmatprep.subr.bf16.mxu0 %v681
        %693 = vmatpush1.bf16.msra.mxu0 %v680
        %694 = vmatprep.subr.bf16.mxu0 0
        %695 = vmatpush1.bf16.msra.mxu0 0
        %696 = vmatprep.subr.bf16.mxu0 0
        %697 = vmatpush1.bf16.msra.mxu0 0
        %698 = vmatprep.subr.bf16.mxu0 0
        %699 = vmatpush1.bf16.msra.mxu0 0
        %700 = vmatprep.subr.bf16.mxu0 0
        %701 = vmatpush1.bf16.msra.mxu0 0
        %702 = vmatprep.subr.bf16.mxu0 0
        %703 = vmatpush1.bf16.msra.mxu0 0
        %704 = vmatprep.subr.bf16.mxu0 0
        %705 = vmatpush1.bf16.msra.mxu0 0
        %706 = vmatprep.subr.bf16.mxu0 0
        %707 = vmatpush1.bf16.msra.mxu0 0
        %708 = vmatprep.subr.bf16.mxu0 0
        %709 = vmatpush1.bf16.msra.mxu0 0
        %710 = vmatprep.subr.bf16.mxu0 0
        %711 = vmatpush1.bf16.msra.mxu0 0
        %712 = vmatprep.subr.bf16.mxu0 0
        %713 = vmatpush1.bf16.msra.mxu0 0
        %714 = vmatprep.subr.bf16.mxu0 0
        %715 = vmatpush1.bf16.msra.mxu0 0
        %716 = vmatprep.subr.bf16.mxu0 0
        %717 = vmatpush1.bf16.msra.mxu0 0
        %718 = vmatprep.subr.bf16.mxu0 0
        %719 = vmatpush1.bf16.msra.mxu0 0
        %720 = vmatprep.subr.bf16.mxu0 0
        %721 = vmatpush1.bf16.msra.mxu0 0
        %722 = vmatprep.mubr.bf16.mxu0 0
        %723 = vmatmul.mubr.bf16.gmra.mrb[0].mxu0 %v688
        %v724 = vpop.f32.mrb[0].mxu0
        %v725 = vadd.f32 0.0, %v724
        %v726 = vpop.f32.mrb[0].mxu0
        %v727 = vadd.f32 0.0, %v726
        %v728 = vpop.f32.mrb[0].mxu0
        %v729 = vpop.f32.mrb[0].mxu0
        %730 = vdwg.mxu0
        %v731 = vmul.f32 %v725, 14.285714
        %v732 = vmul.f32 %v727, 14.285714
        %p733 = scmp.eq.s32.totalorder %s21, 0
        // Predicated region
        $region99: #{memory_moco_forward.1} parent=93 // pred_check
          %p734 = pneg %p733
        $region100: #{memory_moco_forward.1} parent=93 // pred_check_branch
          %736 = sbr.rel (%p734) target = $region102
        $region101: #{memory_moco_forward.1} parent=93 // pred_region
          %v737 = vlaneseq
          %v738 = vand.u32 %v737, 127
          %v739 = vadd.s32 %v738, 128
          %vm740 = vcmp.eq.s32.totalorder %v738, 0
          %vm741 = vcmp.eq.s32.totalorder %v739, 0
          %v742 = vld [vmem:[%s649] sm:$0xff]
          %744 = vset.pattern.permute.xlu0 0
          %745 = vperm.xlu0 %744, %v742
          %v746 = vpop.permute.xlu0 %745
          %v748 = vsel %vm740, %v746, %v731
          %v749 = vsel %vm741, %v746, %v732
          %750 = vst [vmem:[%s641] sm:$0xff] %v748
          %751 = vst [vmem:[%s641 + $0x8] sm:$0xff] %v749
        $region102: #{memory_moco_forward.1} parent=93 // pred_fallthru
          _
        %p752 = scmp.gt.s32.totalorder %s21, 0
        // Predicated region
        $region103: #{memory_moco_forward.1} parent=93 // pred_check
          %p753 = pneg %p752
        $region104: #{memory_moco_forward.1} parent=93 // pred_check_branch
          %755 = sbr.rel (%p753) target = $region106
        $region105: #{memory_moco_forward.1} parent=93 // pred_region
          %756 = vst [vmem:[%s641] sm:$0xff] %v731
          %757 = vst [vmem:[%s641 + $0x8] sm:$0xff] %v732
        $region106: #{memory_moco_forward.1} parent=93 // pred_fallthru
          _
        %s758 = sand.u32 %s117, 1
        %s759 = scalar_lea.sflag [#allocation4], %s758
        %s760 = sand.u32 %s117, 1
        %s761 = smul.addr %s760, 16
        %s762 = scalar_lea.vmem [#allocation3], %s761
        // Predicated region
        $region107: #{memory_moco_forward.1} parent=93 // pred_check
          %p763 = pneg %p127
        $region108: #{memory_moco_forward.1} parent=93 // pred_check_branch
          %765 = sbr.rel (%p763) target = $region110
        $region109: #{memory_moco_forward.1} parent=93 // pred_region
          %s766 = smul.u32 2, %s21
          %s767 = ssub.s32 3, %s766
          %p768 = scmp.lt.s32.totalorder %s767, 2
          %s769 = scalar_select %p768, %s767, 2
          %s770 = smul.u32 128, %s769
          %s772 = ssub.s32 256, %s770
          %773 = vsyncadd %s759, %s772
          %p774 = scmp.ne.s32.totalorder 0, %s770
          %s775 = smul.addr %s22, 3
          %s776 = sadd.s32 %s766, %s775
          %s777 = smul.addr %s776, 128
          %s778 = scalar_lea.hbm %s3, %s777
          %s779 = smul.u32 %s769, 8
          %s780 = sshll.u32 %s779, 4
          %s781 = sshll.u32 %s762, 4
          %s782 = int_to_ptr.vmem [resolvable:$true] %s781
          %784 = dma.vmem_to_hbm [thread:$0]  (%p774), %s782, %s780, %s778, %s759
        $region110: #{memory_moco_forward.1} parent=93 // pred_fallthru
          _
      $region94: #{memory_moco_forward.1} parent=5 // pred_fallthru
        _
      %p785 = scmp.le.s32.totalorder 2, %s12
      // Predicated region
      $region111: #{memory_moco_forward.1} parent=5 // pred_check
        %p786 = pneg %p785
      $region112: #{memory_moco_forward.1} parent=5 // pred_check_branch
        %788 = sbr.rel (%p786) target = $region114
      $region113: #{memory_moco_forward.1} parent=5 // pred_region
        %s789 = ssub.s32 %s12, 2
        // Predicated region
        $region115: #{memory_moco_forward.1} parent=113 // pred_check
          %p790 = pneg %p133
        $region116: #{memory_moco_forward.1} parent=113 // pred_check_branch
          %792 = sbr.rel (%p790) target = $region118
        $region117: #{memory_moco_forward.1} parent=113 // pred_region
          %s793 = sand.u32 %s118, 1
          %s794 = scalar_lea.sflag [#allocation4], %s793
          %s795 = sand.u32 %s118, 1
          %s796 = smul.addr %s795, 16
          %s797 = scalar_lea.vmem [#allocation3], %s796
          %798 = dma.done %s794, 256
        $region118: #{memory_moco_forward.1} parent=113 // pred_fallthru
          _
      $region114: #{memory_moco_forward.1} parent=5 // pred_fallthru
        _
    $region6: #{memory_moco_forward.1} parent=1 // loop_footer
      %s16 = sadd.s32 1, %s12
    $region7: #{memory_moco_forward.1} parent=1 // loop_footer_branch
      %11 = sbr.rel target = $region3
    $region8: #{memory_moco_forward.1} parent=1 // loop_exit
      _
    %799 = vsyncpa [#allocation4], 1
    %s800 = scalar_lea.sflag [#allocation4], 1
    %801 = vsyncpa %s800, 1

</llo_original>
